<compile_context>
chip_gen: v7x
topology: tpu7x:2x2x1
jax: 0.10.0
libtpu: 0.0.40
codegen_flags: <defaults>
</compile_context>

<pallas_src>
import math
import functools

import jax
import jax.numpy as jnp
from jax import lax
from jax.experimental import pallas as pl
from jax.experimental.pallas import tpu as pltpu


def _sdpa_kernel(q_ref, k_ref, v_ref, mask_ref, out_ref, attn_ref=None, *,
                 scale, mask_is_key_padding, approx_reciprocal, exp_in_bf16):
    # Tiles for the current batch block:
    #   q/k/v : (bb, H, S, D) in the input dtype (bf16 feeds the MXU directly)
    #   mask  : (bb, 1, S) int8 key-padding mask OR (bb, 1, S, S) full mask
    #   out   : (bb, S, H*D) lane-dense output slab (one wide store)
    #   attn  : (bb, H, S, S) optional attention distribution
    bb, H, S, D = q_ref.shape

    # Fold (batch_block, heads) into one batch axis for the MXU matmuls
    # (leading-dim-only reshapes: no relayout).
    q = q_ref[...].reshape(bb * H, S, D)
    k = k_ref[...].reshape(bb * H, S, D)
    v = v_ref[...].reshape(bb * H, S, D)

    # attn_score = Q @ K^T / sqrt(hidden_units): both operands contract on
    # their last (lane) dim -> no explicit XLU transpose of K.
    # NOTE: deliberately no K/N tiling — with D = 16..64 the MXU is far from
    # the binding slot for BERT4Rec-sized heads.
    scores = lax.dot_general(
        q, k,
        dimension_numbers=(((2,), (2,)), ((0,), (0,))),
        preferred_element_type=jnp.float32)            # (bb*H, S, S) f32
    scores = scores.reshape(bb, H, S, S) * scale

    # masked_fill(mask == 0, -1e9) (exact PyTorch semantics, incl. fully
    # masked rows degrading to a uniform distribution).
    if mask_is_key_padding:
        keep = (mask_ref[...] != 0)                    # (bb, 1, S)
        keep = keep[:, :, None, :]                     # (bb, 1, 1, S)
    else:
        keep = (mask_ref[...] != 0)                    # (bb, 1, S, S)
    scores = jnp.where(keep, scores, jnp.float32(-1e9))

    # Numerically stable softmax over the key axis (f32 running math).
    row_max = jnp.max(scores, axis=-1, keepdims=True)
    centered = scores - row_max
    if exp_in_bf16:
        # v6e/v7x experiment: halve the EUP exp work (do NOT enable on v5e).
        e = jnp.exp(centered.astype(jnp.bfloat16)).astype(jnp.float32)
    else:
        e = jnp.exp(centered)
    denom = jnp.sum(e, axis=-1, keepdims=True)
    if approx_reciprocal:
        inv = pl.reciprocal(denom, approx=True)        # EUP vrcp slot, ~free
    else:
        inv = 1.0 / denom                              # exact (PyTorch parity)
    attn = e * inv                                     # (bb, H, S, S) f32

    # TODO(synk): dropout is identity here (eval/serving mode); training-mode
    # dropout with PyTorch-identical RNG has no Pallas equivalent.

    # output = attn @ V, batched over the folded (b*h) axis.
    ctx = lax.dot_general(
        attn.reshape(bb * H, S, S).astype(v.dtype), v,
        dimension_numbers=(((2,), (1,)), ((0,), (0,))),
        preferred_element_type=jnp.float32)            # (bb*H, S, D) f32
    ctx = ctx.reshape(bb, H, S, D)

    # Assemble the (bb, S, H*D) slab in registers and write it with a single
    # full-width store — avoids H masked vst.msk strip writes of width D.
    slab = jnp.concatenate([ctx[:, h] for h in range(H)], axis=-1)
    out_ref[...] = slab.astype(out_ref.dtype)

    if attn_ref is not None:
        attn_ref[...] = attn.astype(attn_ref.dtype)


def _padded_bytes(shape, dtype):
    """VMEM footprint of one buffer: last dim pads to 128 lanes, second-to-last
    dim pads to the dtype's sublane packing (f32->8, bf16->16, int8->32)."""
    d = jnp.dtype(dtype)
    sub = 8 * max(1, 4 // d.itemsize)
    dims = [1, 1] + [int(x) for x in shape]
    dims[-1] = -(-dims[-1] // 128) * 128
    dims[-2] = -(-dims[-2] // sub) * sub
    n = 1
    for x in dims:
        n *= x
    return n * d.itemsize


def _tpu_vmem_config():
    """Generation-aware VMEM planning.

    Returns (block_budget_bytes, vmem_limit_bytes, require_two_grid_steps).
    v5e/v6e: 128 MiB VMEM, 1 TensorCore -> big budget, no >=2-step cap.
    v7x-sized (64 MiB) VMEM, 2 TensorCores -> 40/48 MiB, keep >=2 grid steps.
    """
    try:
        cap = int(pltpu.get_tpu_info().vmem_capacity_bytes)
    except Exception:
        cap = 64 * 1024 * 1024                 # conservative fallback
    if cap >= 128 * 1024 * 1024:               # v5e / v6e
        return 96 * 1024 * 1024, 108 * 1024 * 1024, False
    return 40 * 1024 * 1024, 48 * 1024 * 1024, True   # v7x-like


def _pick_block_b(B, H, S, D, in_dtype, out_dtype, attn_dtype, return_attn,
                  mask_is_key_padding, single_buffer_attn,
                  budget_bytes, require_two_steps):
    """Largest batch block whose (pipelined + live) VMEM footprint fits the
    budget, optionally keeping >= 2 grid steps for two-TensorCore chips."""
    def step_bytes(bb):
        n = 3 * 2 * _padded_bytes((bb, H, S, D), in_dtype)       # Q,K,V x2 bufs
        if mask_is_key_padding:
            n += 2 * _padded_bytes((bb, 1, S), jnp.int8)
        else:
            n += 2 * _padded_bytes((bb, 1, S, S), jnp.int8)
        n += 2 * _padded_bytes((bb, S, H * D), out_dtype)        # output slab
        if return_attn:
            bufs = 1 if single_buffer_attn else 2
            n += bufs * _padded_bytes((bb, H, S, S), attn_dtype)
        # Live in-kernel intermediates (single copies): f32 scores, f32 exp /
        # attn values, f32 ctx, f32 slab.
        n += 2 * _padded_bytes((bb, H, S, S), jnp.float32)
        n += _padded_bytes((bb, H, S, D), jnp.float32)
        n += _padded_bytes((bb, S, H * D), jnp.float32)
        return n

    cap = max(1, B // 2) if require_two_steps else B
    best = 1
    for bb in range(1, cap + 1):
        if B % bb == 0 and step_bytes(bb) <= budget_bytes:
            best = bb
    return best


def scaled_dot_product_attention(Q, K, V, mask, hidden_units, *,
                                 return_attn=False, concat_heads=False,
                                 attn_dtype=jnp.float32,
                                 approx_reciprocal=False,
                                 exp_in_bf16=False,
                                 single_buffer_attn=False):
    """Forward of ScaledDotProductAttention.

    mask: [B, S] key-padding mask (preferred, nonzero = keep) or [B, 1, S, S].
    Returns output (and attn_dist [B,H,S,S] f32 if return_attn). The output is
    [B, H, S, D] (module layout) unless concat_heads=True, in which case the
    lane-dense [B, S, H*D] slab is returned directly (what MultiHeadAttention
    consumes right before W_O, skipping the wrapper transpose).
    """
    B, H, S, D = Q.shape
    scale = 1.0 / math.sqrt(hidden_units)

    mask = jnp.asarray(mask)
    if mask.ndim == 2:
        mask_is_key_padding = True
        mask_ship = mask.reshape(B, 1, S)
    elif mask.ndim == 4:
        mask_is_key_padding = False
        mask_ship = mask
    else:
        raise ValueError(f"mask must be [B, S] or [B, 1, S, S], got {mask.shape}")
    if mask_ship.dtype != jnp.int8:          # skip when already shipped compact
        mask_ship = (mask_ship != 0).astype(jnp.int8)

    out_dtype = Q.dtype
    attn_dtype = jnp.dtype(attn_dtype)
    budget, vmem_limit, require_two_steps = _tpu_vmem_config()
    block_b = _pick_block_b(B, H, S, D, Q.dtype, out_dtype, attn_dtype,
                            return_attn, mask_is_key_padding,
                            single_buffer_attn, budget, require_two_steps)
    grid = (B // block_b,)
    # TODO(synk): for S >~ 1k the full (bb,H,S,S) scores no longer fit VMEM
    # even at bb=1; that regime needs a flash-style key-block inner loop.

    kernel = functools.partial(
        _sdpa_kernel, scale=scale, mask_is_key_padding=mask_is_key_padding,
        approx_reciprocal=approx_reciprocal, exp_in_bf16=exp_in_bf16)

    qkv_spec = pl.BlockSpec((block_b, H, S, D), lambda i: (i, 0, 0, 0))
    if mask_is_key_padding:
        mask_spec = pl.BlockSpec((block_b, 1, S), lambda i: (i, 0, 0))
    else:
        mask_spec = pl.BlockSpec((block_b, 1, S, S), lambda i: (i, 0, 0, 0))

    out_slab_shape = jax.ShapeDtypeStruct((B, S, H * D), out_dtype)
    out_slab_spec = pl.BlockSpec((block_b, S, H * D), lambda i: (i, 0, 0))
    if return_attn:
        if single_buffer_attn:
            # v7x experiment: single-buffer the (largest) attn writeback so a
            # bigger block_b fits 64 MiB VMEM; sweep vs. default double-buffer.
            attn_spec = pl.BlockSpec((block_b, H, S, S), lambda i: (i, 0, 0, 0),
                                     pipeline_mode=pl.Buffered(1))
        else:
            attn_spec = pl.BlockSpec((block_b, H, S, S), lambda i: (i, 0, 0, 0))
        out_shape = (out_slab_shape,
                     jax.ShapeDtypeStruct((B, H, S, S), attn_dtype))
        out_specs = (out_slab_spec, attn_spec)
    else:
        out_shape = out_slab_shape
        out_specs = out_slab_spec

    results = pl.pallas_call(
        kernel,
        out_shape=out_shape,
        grid=grid,
        in_specs=[qkv_spec, qkv_spec, qkv_spec, mask_spec],
        out_specs=out_specs,
        compiler_params=pltpu.CompilerParams(
            dimension_semantics=("parallel",),
            vmem_limit_bytes=vmem_limit),
    )(Q, K, V, mask_ship)

    if return_attn:
        out_slab, attn = results
    else:
        out_slab, attn = results, None

    if concat_heads:
        out = out_slab                                   # [B, S, H*D]
    else:
        # Restore the PyTorch module's [B, H, S, D] return layout (wrapper-side
        # layout plumbing; the kernel's HBM writeback stays lane-dense).
        out = out_slab.reshape(B, S, H, D).transpose(0, 2, 1, 3)
    return (out, attn) if return_attn else out


def _reference(Q, K, V, mask4d, hidden_units):
    scores = jnp.einsum("bhqd,bhkd->bhqk", Q, K) / math.sqrt(hidden_units)
    scores = jnp.where(mask4d == 0, -1e9, scores)
    attn = jax.nn.softmax(scores, axis=-1)
    out = jnp.einsum("bhqk,bhkd->bhqd", attn, V)
    return out, attn


if __name__ == "__main__":
    B, H, S, D = 2, 2, 8, 16
    hidden_units = H * D  # 32, matches the module's sqrt(hidden_units) scaling

    key = jax.random.PRNGKey(0)
    kq, kk, kv, ks = jax.random.split(key, 4)
    Q = jax.random.normal(kq, (B, H, S, D), dtype=jnp.float32)
    K = jax.random.normal(kk, (B, H, S, D), dtype=jnp.float32)
    V = jax.random.normal(kv, (B, H, S, D), dtype=jnp.float32)

    # BERT4Rec-style padding mask built from item ids (0 = padding).
    log_seqs = jax.random.randint(ks, (B, S), 0, 5)
    key_mask = (log_seqs > 0)                                   # [B, S]
    full_mask = jnp.broadcast_to(key_mask[:, None, None, :], (B, 1, S, S))

    out_ref, attn_ref = _reference(Q, K, V, full_mask, hidden_units)

    # Module-parity path: key-padding mask, output + attn_dist (f32, exact
    # softmax reciprocal).
    out, attn = scaled_dot_product_attention(Q, K, V, key_mask, hidden_units,
                                             return_attn=True)
    out = jax.block_until_ready(out)
    attn = jax.block_until_ready(attn)
    assert out.shape == (B, H, S, D) and attn.shape == (B, H, S, S)
    assert attn.dtype == jnp.float32
    assert jnp.allclose(out, out_ref, atol=1e-3, rtol=1e-3)
    assert jnp.allclose(attn, attn_ref, atol=1e-3, rtol=1e-3)

    # Full [B, 1, S, S] mask path (exact module interface).
    out4, attn4 = scaled_dot_product_attention(Q, K, V, full_mask, hidden_units,
                                               return_attn=True)
    out4 = jax.block_until_ready(out4)
    assert jnp.allclose(out4, out_ref, atol=1e-3, rtol=1e-3)
    assert jnp.allclose(attn4, attn_ref, atol=1e-3, rtol=1e-3)

    # Performance default: no attn writeback, lane-dense [B, S, H*D] slab that
    # MultiHeadAttention feeds straight into W_O (skips the wrapper transpose).
    slab = scaled_dot_product_attention(Q, K, V, key_mask, hidden_units,
                                        return_attn=False, concat_heads=True)
    slab = jax.block_until_ready(slab)
    ref_slab = jnp.transpose(out_ref, (0, 2, 1, 3)).reshape(B, S, H * D)
    assert slab.shape == (B, S, H * D)
    assert jnp.allclose(slab, ref_slab, atol=1e-3, rtol=1e-3)

    # bf16 path: inputs feed the MXU directly; attn_dist stays f32 by default.
    Qb, Kb, Vb = (x.astype(jnp.bfloat16) for x in (Q, K, V))
    out_b, attn_b = scaled_dot_product_attention(Qb, Kb, Vb, key_mask,
                                                 hidden_units, return_attn=True)
    out_b = jax.block_until_ready(out_b)
    assert out_b.shape == (B, H, S, D) and out_b.dtype == jnp.bfloat16
    assert attn_b.dtype == jnp.float32
    assert float(jnp.max(jnp.abs(out_b.astype(jnp.float32) - out_ref))) < 0.1

    print("KERNEL_OK")
</pallas_src>

<mosaic_0001>
module attributes {stable_mosaic.version = 11 : i64} {
  func.func @_sdpa_kernel(%arg0: i32, %arg1: memref<1x2x8x16xf32, #tpu.memory_space<vmem>>, %arg2: memref<1x2x8x16xf32, #tpu.memory_space<vmem>>, %arg3: memref<1x2x8x16xf32, #tpu.memory_space<vmem>>, %arg4: memref<1x1x8xi8, #tpu.memory_space<vmem>>, %arg5: memref<1x8x32xf32, #tpu.memory_space<vmem>>, %arg6: memref<1x2x8x8xf32, #tpu.memory_space<vmem>>) attributes {dimension_semantics = [#tpu.dimension_semantics<parallel>], iteration_bounds = array<i64: 2>, scalar_prefetch = 0 : i64, scratch_operands = 0 : i64, tpu.core_type = #tpu.core_type<tc>, window_params = [{transform_indices = @transform_0, window_bounds = array<i64: 1, 2, 8, 16>}, {transform_indices = @transform_1, window_bounds = array<i64: 1, 2, 8, 16>}, {transform_indices = @transform_2, window_bounds = array<i64: 1, 2, 8, 16>}, {transform_indices = @transform_3, window_bounds = array<i64: 1, 1, 8>}, {transform_indices = @transform_4, window_bounds = array<i64: 1, 8, 32>}, {transform_indices = @transform_5, window_bounds = array<i64: 1, 2, 8, 8>}]} {
    %c0 = arith.constant 0 : index
    %c0_0 = arith.constant 0 : index
    %c0_1 = arith.constant 0 : index
    %c0_2 = arith.constant 0 : index
    %0 = vector.load %arg1[%c0, %c0_0, %c0_1, %c0_2] : memref<1x2x8x16xf32, #tpu.memory_space<vmem>>, vector<1x2x8x16xf32>
    %1 = vector.shape_cast %0 : vector<1x2x8x16xf32> to vector<2x8x16xf32>
    %c0_3 = arith.constant 0 : index
    %c0_4 = arith.constant 0 : index
    %c0_5 = arith.constant 0 : index
    %c0_6 = arith.constant 0 : index
    %2 = vector.load %arg2[%c0_3, %c0_4, %c0_5, %c0_6] : memref<1x2x8x16xf32, #tpu.memory_space<vmem>>, vector<1x2x8x16xf32>
    %3 = vector.shape_cast %2 : vector<1x2x8x16xf32> to vector<2x8x16xf32>
    %c0_7 = arith.constant 0 : index
    %c0_8 = arith.constant 0 : index
    %c0_9 = arith.constant 0 : index
    %c0_10 = arith.constant 0 : index
    %4 = vector.load %arg3[%c0_7, %c0_8, %c0_9, %c0_10] : memref<1x2x8x16xf32, #tpu.memory_space<vmem>>, vector<1x2x8x16xf32>
    %5 = vector.shape_cast %4 : vector<1x2x8x16xf32> to vector<2x8x16xf32>
    %cst = arith.constant dense<0.000000e+00> : vector<2x8x8xf32>
    %6 = tpu.matmul %1, %3, %cst {dimension_numbers = #tpu.dot_dimension_numbers<[2], [2], [1], [1], [0, 0, 0, 1, 1, 1], [0], [0]>} : vector<2x8x16xf32>, vector<2x8x16xf32>, vector<2x8x8xf32> -> vector<2x8x8xf32>
    %7 = vector.shape_cast %6 : vector<2x8x8xf32> to vector<1x2x8x8xf32>
    %cst_11 = arith.constant 0.176776692 : f32
    %8 = vector.broadcast %cst_11 : f32 to vector<1x2x8x8xf32>
    %9 = arith.mulf %7, %8 : vector<1x2x8x8xf32>
    %c0_12 = arith.constant 0 : index
    %c0_13 = arith.constant 0 : index
    %c0_14 = arith.constant 0 : index
    %10 = vector.load %arg4[%c0_12, %c0_13, %c0_14] : memref<1x1x8xi8, #tpu.memory_space<vmem>>, vector<1x1x8xi8>
    %c0_i8 = arith.constant 0 : i8
    %11 = vector.broadcast %c0_i8 : i8 to vector<1x1x8xi8>
    %12 = arith.cmpi ne, %10, %11 : vector<1x1x8xi8>
    %13 = vector.shape_cast %12 : vector<1x1x8xi1> to vector<1x1x1x8xi1>
    %cst_15 = arith.constant -1.000000e+09 : f32
    %14 = vector.shape_cast %13 : vector<1x1x1x8xi1> to vector<1x1x1x8xi1>
    %15 = vector.broadcast %14 : vector<1x1x1x8xi1> to vector<1x2x8x8xi1>
    %16 = vector.broadcast %cst_15 : f32 to vector<1x2x8x8xf32>
    %17 = arith.select %15, %9, %16 : vector<1x2x8x8xi1>, vector<1x2x8x8xf32>
    %cst_16 = arith.constant dense<0xFF800000> : vector<1x2x8xf32>
    %18 = vector.multi_reduction <maximumf>, %17, %cst_16 [3] : vector<1x2x8x8xf32> to vector<1x2x8xf32>
    %19 = vector.shape_cast %18 : vector<1x2x8xf32> to vector<1x2x8x1xf32>
    %20 = vector.broadcast %19 : vector<1x2x8x1xf32> to vector<1x2x8x8xf32>
    %21 = arith.subf %17, %20 : vector<1x2x8x8xf32>
    %22 = math.exp %21 : vector<1x2x8x8xf32>
    %cst_17 = arith.constant dense<0.000000e+00> : vector<1x2x8xf32>
    %23 = vector.multi_reduction <add>, %22, %cst_17 [3] : vector<1x2x8x8xf32> to vector<1x2x8xf32>
    %24 = vector.shape_cast %23 : vector<1x2x8xf32> to vector<1x2x8x1xf32>
    %cst_18 = arith.constant 1.000000e+00 : f32
    %25 = vector.broadcast %cst_18 : f32 to vector<1x2x8x1xf32>
    %26 = arith.divf %25, %24 : vector<1x2x8x1xf32>
    %27 = vector.broadcast %26 : vector<1x2x8x1xf32> to vector<1x2x8x8xf32>
    %28 = arith.mulf %22, %27 : vector<1x2x8x8xf32>
    %29 = vector.shape_cast %28 : vector<1x2x8x8xf32> to vector<2x8x8xf32>
    %cst_19 = arith.constant dense<0.000000e+00> : vector<2x8x16xf32>
    %30 = tpu.matmul %29, %5, %cst_19 {dimension_numbers = #tpu.dot_dimension_numbers<[2], [1], [1], [2], [0, 0, 0, 1, 1, 2], [0], [0]>} : vector<2x8x8xf32>, vector<2x8x16xf32>, vector<2x8x16xf32> -> vector<2x8x16xf32>
    %31 = vector.shape_cast %30 : vector<2x8x16xf32> to vector<1x2x8x16xf32>
    %32 = vector.extract_strided_slice %31 {offsets = [0, 0, 0, 0], sizes = [1, 1, 8, 16], strides = [1, 1, 1, 1]} : vector<1x2x8x16xf32> to vector<1x1x8x16xf32>
    %33 = vector.shape_cast %32 : vector<1x1x8x16xf32> to vector<1x8x16xf32>
    %34 = vector.extract_strided_slice %31 {offsets = [0, 1, 0, 0], sizes = [1, 1, 8, 16], strides = [1, 1, 1, 1]} : vector<1x2x8x16xf32> to vector<1x1x8x16xf32>
    %35 = vector.shape_cast %34 : vector<1x1x8x16xf32> to vector<1x8x16xf32>
    %36 = tpu.concatenate %33, %35 in 2 : vector<1x8x16xf32>, vector<1x8x16xf32> -> vector<1x8x32xf32>
    %c0_20 = arith.constant 0 : index
    %c0_21 = arith.constant 0 : index
    %c0_22 = arith.constant 0 : index
    %37 = vector.load %arg5[%c0_20, %c0_21, %c0_22] : memref<1x8x32xf32, #tpu.memory_space<vmem>>, vector<1x8x32xf32>
    tpu.vector_store %arg5[%c0_20, %c0_21, %c0_22], %36 {strides = array<i32>} : memref<1x8x32xf32, #tpu.memory_space<vmem>>, vector<1x8x32xf32>,
    %c0_23 = arith.constant 0 : index
    %c0_24 = arith.constant 0 : index
    %c0_25 = arith.constant 0 : index
    %c0_26 = arith.constant 0 : index
    %38 = vector.load %arg6[%c0_23, %c0_24, %c0_25, %c0_26] : memref<1x2x8x8xf32, #tpu.memory_space<vmem>>, vector<1x2x8x8xf32>
    tpu.vector_store %arg6[%c0_23, %c0_24, %c0_25, %c0_26], %28 {strides = array<i32>} : memref<1x2x8x8xf32, #tpu.memory_space<vmem>>, vector<1x2x8x8xf32>,
    return
  }
  func.func @transform_0(%arg0: i32) -> (i32, i32, i32, i32) {
    %c0_i32 = arith.constant 0 : i32
    %c0_i32_0 = arith.constant 0 : i32
    %c0_i32_1 = arith.constant 0 : i32
    %c0_i32_2 = arith.constant 0 : i32
    return %arg0, %c0_i32, %c0_i32_0, %c0_i32_1 : i32, i32, i32, i32
  }
  func.func @transform_1(%arg0: i32) -> (i32, i32, i32, i32) {
    %c0_i32 = arith.constant 0 : i32
    %c0_i32_0 = arith.constant 0 : i32
    %c0_i32_1 = arith.constant 0 : i32
    %c0_i32_2 = arith.constant 0 : i32
    return %arg0, %c0_i32, %c0_i32_0, %c0_i32_1 : i32, i32, i32, i32
  }
  func.func @transform_2(%arg0: i32) -> (i32, i32, i32, i32) {
    %c0_i32 = arith.constant 0 : i32
    %c0_i32_0 = arith.constant 0 : i32
    %c0_i32_1 = arith.constant 0 : i32
    %c0_i32_2 = arith.constant 0 : i32
    return %arg0, %c0_i32, %c0_i32_0, %c0_i32_1 : i32, i32, i32, i32
  }
  func.func @transform_3(%arg0: i32) -> (i32, i32, i32) {
    %c0_i32 = arith.constant 0 : i32
    %c0_i32_0 = arith.constant 0 : i32
    %c0_i32_1 = arith.constant 0 : i32
    return %arg0, %c0_i32, %c0_i32_0 : i32, i32, i32
  }
  func.func @transform_4(%arg0: i32) -> (i32, i32, i32) {
    %c0_i32 = arith.constant 0 : i32
    %c0_i32_0 = arith.constant 0 : i32
    %c0_i32_1 = arith.constant 0 : i32
    return %arg0, %c0_i32, %c0_i32_0 : i32, i32, i32
  }
  func.func @transform_5(%arg0: i32) -> (i32, i32, i32, i32) {
    %c0_i32 = arith.constant 0 : i32
    %c0_i32_0 = arith.constant 0 : i32
    %c0_i32_1 = arith.constant 0 : i32
    %c0_i32_2 = arith.constant 0 : i32
    return %arg0, %c0_i32, %c0_i32_0, %c0_i32_1 : i32, i32, i32, i32
  }
}

</mosaic_0001>

<llo_original>
// kernel: tpu_custom_call.1
$region0: #{tpu_custom_call.1}
  #allocation0 [shape = 'u32[]', space=smem, size = 0x4, offset = 0x4, fixed_abs, tag = 'smem constant byte address 0x4 - core index']
  #allocation1 [shape = 'u32[144,128]{1,0:T(1,128)}', space=vmem, size = 0x12000, scoped, tag = 'internal scratch']
  %s0 = inlined_call_operand.hbm [shape: f32[2,2,8,16], index: 0, kind: input, shape index: {}]
  %s1 = inlined_call_operand.hbm [shape: f32[2,2,8,16], index: 1, kind: input, shape index: {}]
  %s2 = inlined_call_operand.hbm [shape: f32[2,2,8,16], index: 2, kind: input, shape index: {}]
  %s3 = inlined_call_operand.vmem [shape: s8[2,1,8], index: 3, kind: input, shape index: {}]
  %s4 = inlined_call_operand.hbm [shape: f32[2,8,32], index: 4, kind: output, shape index: {0}]
  %s5 = inlined_call_operand.hbm [shape: f32[2,2,8,8], index: 5, kind: output, shape index: {1}]
  %6 = xla_tuple %s4, %s5
  %s7 = sld [smem:[#allocation0]]
  $region69: #{tpu_custom_call.1} parent=0
    _
  %s9 = ssub.s32 1, %s7
  %s10 = scalar_select 0, %s9, %s7
  $region1: #{tpu_custom_call.1} parent=0
    #allocation2 [shape = 'u8[16384]{0}', space=vmem, size = 0x4000, scoped, tag = 'input window, operand 0']
    #allocation3 [shape = 's32[2]{0}', space=sflag, size = 0x8, scoped, tag = 'scoped memory for tpu_custom_call.1']
    #allocation4 [shape = 's32[2]{0}', space=sflag, size = 0x8, scoped, tag = 'scoped memory for tpu_custom_call.1']
    #allocation5 [shape = 'u8[16384]{0}', space=vmem, size = 0x4000, scoped, tag = 'input window, operand 1']
    #allocation6 [shape = 's32[2]{0}', space=sflag, size = 0x8, scoped, tag = 'scoped memory for tpu_custom_call.1']
    #allocation7 [shape = 'u8[16384]{0}', space=vmem, size = 0x4000, scoped, tag = 'input window, operand 2']
    #allocation8 [shape = 'u8[8192]{0}', space=vmem, size = 0x2000, scoped, tag = 'output window, operand 0']
    #allocation9 [shape = 'u8[16384]{0}', space=vmem, size = 0x4000, scoped, tag = 'output window, operand 1']
    #allocation10 [shape = 's32[2]{0}', space=sflag, size = 0x8, scoped, tag = 'scoped memory for tpu_custom_call.1']
    %11 = vsyncpa [#allocation3], 0
    %s12 = scalar_lea.sflag [#allocation3], 1
    %13 = vsyncpa %s12, 0
    %14 = vsyncpa [#allocation6], 0
    %s15 = scalar_lea.sflag [#allocation6], 1
    %16 = vsyncpa %s15, 0
    %17 = vsyncpa [#allocation4], 0
    %s18 = scalar_lea.sflag [#allocation4], 1
    %19 = vsyncpa %s18, 0
    %20 = vsyncpa [#allocation10], 0
    %s21 = scalar_lea.sflag [#allocation10], 1
    %22 = vsyncpa %s21, 0
    loop: start=0, step=1, limit=4
    $region2: #{tpu_custom_call.1} parent=1 // loop_pre_header
      _
    $region3: #{tpu_custom_call.1} parent=1 // loop_header
      %s24 = sphi 0, %s28
      %p25 = scmp.ge.s32.totalorder %s24, 4
      %s34 = sphi 0, %s36
      %s37 = sphi 0, %s34
      %s38 = sphi 0, %s37
      %s54 = sphi 0, %s38
      %s60 = sphi 0, %s62
      %s63 = sphi 0, %s60
      %s64 = sphi 0, %s63
      %s80 = sphi 0, %s64
      %s86 = sphi 0, %s88
      %s89 = sphi 0, %s86
      %s90 = sphi 0, %s89
      %s106 = sphi 0, %s90
      %s112 = sphi 0, %s114
      %s115 = sphi 0, %s112
      %s116 = sphi 0, %s115
      %s132 = sphi 0, %s116
      %s138 = sphi 0, %s140
      %s141 = sphi 0, %s138
      %s142 = sphi 0, %s141
      %s158 = sphi 0, %s142
      %s164 = sphi 0, %s166
      %s167 = sphi 0, %s164
      %s168 = sphi 0, %s167
      %s184 = sphi 0, %s168
    $region4: #{tpu_custom_call.1} parent=1 // loop_header_branch
      %27 = sbr.rel (%p25) target = $region8
    $region5: #{tpu_custom_call.1} parent=1 // loop_body
      %s29 = ssub.s32 %s24, 1
      %s30 = ssub.s32 %s24, 2
      %s31 = sadd.s32 %s24, 1
      %s32 = ssub.s32 %s24, %s31
      %p33 = scmp.eq.s32.totalorder %s32, 0
      %s35 = sadd.s32 %s34, 1
      %s36 = scalar_select %p33, %s34, %s35
      %p39 = pneg %p33
      %p40 = scmp.eq.s32.totalorder %s24, 1
      %p41 = por %p39, %p40
      %p42 = scmp.ne.s32.totalorder %s34, %s37
      %p43 = scmp.eq.s32.totalorder %s24, 0
      %p44 = por %p42, %p43
      %p45 = scmp.ne.s32.totalorder %s34, %s37
      %p46 = scmp.eq.s32.totalorder %s29, 1
      %p47 = por %p45, %p46
      %p48 = scmp.ne.s32.totalorder %s37, %s38
      %p49 = scmp.eq.s32.totalorder %s29, 0
      %p50 = por %p48, %p49
      %p51 = scmp.ne.s32.totalorder %s37, %s38
      %p52 = scmp.eq.s32.totalorder %s30, 1
      %p53 = por %p51, %p52
      %p55 = scmp.ne.s32.totalorder %s38, %s54
      %p56 = scmp.eq.s32.totalorder %s30, 0
      %p57 = por %p55, %p56
      %s58 = ssub.s32 %s24, %s31
      %p59 = scmp.eq.s32.totalorder %s58, 0
      %s61 = sadd.s32 %s60, 1
      %s62 = scalar_select %p59, %s60, %s61
      %p65 = pneg %p59
      %p66 = scmp.eq.s32.totalorder %s24, 1
      %p67 = por %p65, %p66
      %p68 = scmp.ne.s32.totalorder %s60, %s63
      %p69 = scmp.eq.s32.totalorder %s24, 0
      %p70 = por %p68, %p69
      %p71 = scmp.ne.s32.totalorder %s60, %s63
      %p72 = scmp.eq.s32.totalorder %s29, 1
      %p73 = por %p71, %p72
      %p74 = scmp.ne.s32.totalorder %s63, %s64
      %p75 = scmp.eq.s32.totalorder %s29, 0
      %p76 = por %p74, %p75
      %p77 = scmp.ne.s32.totalorder %s63, %s64
      %p78 = scmp.eq.s32.totalorder %s30, 1
      %p79 = por %p77, %p78
      %p81 = scmp.ne.s32.totalorder %s64, %s80
      %p82 = scmp.eq.s32.totalorder %s30, 0
      %p83 = por %p81, %p82
      %s84 = ssub.s32 %s24, %s31
      %p85 = scmp.eq.s32.totalorder %s84, 0
      %s87 = sadd.s32 %s86, 1
      %s88 = scalar_select %p85, %s86, %s87
      %p91 = pneg %p85
      %p92 = scmp.eq.s32.totalorder %s24, 1
      %p93 = por %p91, %p92
      %p94 = scmp.ne.s32.totalorder %s86, %s89
      %p95 = scmp.eq.s32.totalorder %s24, 0
      %p96 = por %p94, %p95
      %p97 = scmp.ne.s32.totalorder %s86, %s89
      %p98 = scmp.eq.s32.totalorder %s29, 1
      %p99 = por %p97, %p98
      %p100 = scmp.ne.s32.totalorder %s89, %s90
      %p101 = scmp.eq.s32.totalorder %s29, 0
      %p102 = por %p100, %p101
      %p103 = scmp.ne.s32.totalorder %s89, %s90
      %p104 = scmp.eq.s32.totalorder %s30, 1
      %p105 = por %p103, %p104
      %p107 = scmp.ne.s32.totalorder %s90, %s106
      %p108 = scmp.eq.s32.totalorder %s30, 0
      %p109 = por %p107, %p108
      %s110 = ssub.s32 %s24, %s31
      %p111 = scmp.eq.s32.totalorder %s110, 0
      %s113 = sadd.s32 %s112, 1
      %s114 = scalar_select %p111, %s112, %s113
      %p117 = pneg %p111
      %p118 = scmp.eq.s32.totalorder %s24, 1
      %p119 = por %p117, %p118
      %p120 = scmp.ne.s32.totalorder %s112, %s115
      %p121 = scmp.eq.s32.totalorder %s24, 0
      %p122 = por %p120, %p121
      %p123 = scmp.ne.s32.totalorder %s112, %s115
      %p124 = scmp.eq.s32.totalorder %s29, 1
      %p125 = por %p123, %p124
      %p126 = scmp.ne.s32.totalorder %s115, %s116
      %p127 = scmp.eq.s32.totalorder %s29, 0
      %p128 = por %p126, %p127
      %p129 = scmp.ne.s32.totalorder %s115, %s116
      %p130 = scmp.eq.s32.totalorder %s30, 1
      %p131 = por %p129, %p130
      %p133 = scmp.ne.s32.totalorder %s116, %s132
      %p134 = scmp.eq.s32.totalorder %s30, 0
      %p135 = por %p133, %p134
      %s136 = ssub.s32 %s24, %s31
      %p137 = scmp.eq.s32.totalorder %s136, 0
      %s139 = sadd.s32 %s138, 1
      %s140 = scalar_select %p137, %s138, %s139
      %p143 = pneg %p137
      %p144 = scmp.eq.s32.totalorder %s24, 1
      %p145 = por %p143, %p144
      %p146 = scmp.ne.s32.totalorder %s138, %s141
      %p147 = scmp.eq.s32.totalorder %s24, 0
      %p148 = por %p146, %p147
      %p149 = scmp.ne.s32.totalorder %s138, %s141
      %p150 = scmp.eq.s32.totalorder %s29, 1
      %p151 = por %p149, %p150
      %p152 = scmp.ne.s32.totalorder %s141, %s142
      %p153 = scmp.eq.s32.totalorder %s29, 0
      %p154 = por %p152, %p153
      %p155 = scmp.ne.s32.totalorder %s141, %s142
      %p156 = scmp.eq.s32.totalorder %s30, 1
      %p157 = por %p155, %p156
      %p159 = scmp.ne.s32.totalorder %s142, %s158
      %p160 = scmp.eq.s32.totalorder %s30, 0
      %p161 = por %p159, %p160
      %s162 = ssub.s32 %s24, %s31
      %p163 = scmp.eq.s32.totalorder %s162, 0
      %s165 = sadd.s32 %s164, 1
      %s166 = scalar_select %p163, %s164, %s165
      %p169 = pneg %p163
      %p170 = scmp.eq.s32.totalorder %s24, 1
      %p171 = por %p169, %p170
      %p172 = scmp.ne.s32.totalorder %s164, %s167
      %p173 = scmp.eq.s32.totalorder %s24, 0
      %p174 = por %p172, %p173
      %p175 = scmp.ne.s32.totalorder %s164, %s167
      %p176 = scmp.eq.s32.totalorder %s29, 1
      %p177 = por %p175, %p176
      %p178 = scmp.ne.s32.totalorder %s167, %s168
      %p179 = scmp.eq.s32.totalorder %s29, 0
      %p180 = por %p178, %p179
      %p181 = scmp.ne.s32.totalorder %s167, %s168
      %p182 = scmp.eq.s32.totalorder %s30, 1
      %p183 = por %p181, %p182
      %p185 = scmp.ne.s32.totalorder %s168, %s184
      %p186 = scmp.eq.s32.totalorder %s30, 0
      %p187 = por %p185, %p186
      %p188 = scmp.le.s32.totalorder 1, %s24
      %p189 = scmp.lt.s32.totalorder %s24, 3
      %p190 = pnand %p188, %p189
      %p191 = pneg %p190
      // Predicated region
      $region9: #{tpu_custom_call.1} parent=5 // pred_check
        _
      $region10: #{tpu_custom_call.1} parent=5 // pred_check_branch
        %193 = sbr.rel (%p190) target = $region12
      $region11: #{tpu_custom_call.1} parent=5 // pred_region
        %s194 = ssub.s32 %s24, 1
      $region12: #{tpu_custom_call.1} parent=5 // pred_fallthru
        _
      %p195 = scmp.lt.s32.totalorder %s24, 2
      // Predicated region
      $region13: #{tpu_custom_call.1} parent=5 // pred_check
        %p196 = pneg %p195
      $region14: #{tpu_custom_call.1} parent=5 // pred_check_branch
        %198 = sbr.rel (%p196) target = $region16
      $region15: #{tpu_custom_call.1} parent=5 // pred_region
        // Predicated region
        $region17: #{tpu_custom_call.1} parent=15 // pred_check
          %p199 = pneg %p44
        $region18: #{tpu_custom_call.1} parent=15 // pred_check_branch
          %201 = sbr.rel (%p199) target = $region20
        $region19: #{tpu_custom_call.1} parent=15 // pred_region
          %s202 = sand.u32 %s34, 1
          %s203 = scalar_lea.sflag [#allocation3], %s202
          %s204 = sand.u32 %s34, 1
          %s205 = smul.addr %s204, 16
          %s206 = scalar_lea.vmem [#allocation2], %s205
          %s208 = ssub.s32 256, 256
          %209 = vsyncadd %s203, %s208
          %s210 = smul.addr %s24, 2
          %s211 = smul.addr %s210, 128
          %s212 = scalar_lea.hbm %s0, %s211
          %s213 = sshll.u32 %s206, 4
          %s214 = int_to_ptr.vmem [resolvable:$true] %s213
          %219 = dma.hbm_to_vmem [thread:$0]  %s212, 256, %s214, %s203, 128, 128, 8
        $region20: #{tpu_custom_call.1} parent=15 // pred_fallthru
          _
        // Predicated region
        $region21: #{tpu_custom_call.1} parent=15 // pred_check
          %p220 = pneg %p70
        $region22: #{tpu_custom_call.1} parent=15 // pred_check_branch
          %222 = sbr.rel (%p220) target = $region24
        $region23: #{tpu_custom_call.1} parent=15 // pred_region
          %s223 = sand.u32 %s24, 1
          %s224 = scalar_lea.sflag [#allocation6], %s223
          %s225 = sand.u32 %s60, 1
          %s226 = smul.addr %s225, 16
          %s227 = scalar_lea.vmem [#allocation5], %s226
          %s229 = ssub.s32 256, 256
          %230 = vsyncadd %s224, %s229
          %s231 = smul.addr %s24, 2
          %s232 = smul.addr %s231, 128
          %s233 = scalar_lea.hbm %s1, %s232
          %s234 = sshll.u32 %s227, 4
          %s235 = int_to_ptr.vmem [resolvable:$true] %s234
          %240 = dma.hbm_to_vmem [thread:$0]  %s233, 256, %s235, %s224, 128, 128, 8
        $region24: #{tpu_custom_call.1} parent=15 // pred_fallthru
          _
        // Predicated region
        $region25: #{tpu_custom_call.1} parent=15 // pred_check
          %p241 = pneg %p96
        $region26: #{tpu_custom_call.1} parent=15 // pred_check_branch
          %243 = sbr.rel (%p241) target = $region28
        $region27: #{tpu_custom_call.1} parent=15 // pred_region
          %s244 = sand.u32 %s24, 1
          %s245 = scalar_lea.sflag [#allocation6], %s244
          %s246 = sand.u32 %s86, 1
          %s247 = smul.addr %s246, 16
          %s248 = scalar_lea.vmem [#allocation7], %s247
          %s250 = ssub.s32 256, 256
          %251 = vsyncadd %s245, %s250
          %s252 = smul.addr %s24, 2
          %s253 = smul.addr %s252, 128
          %s254 = scalar_lea.hbm %s2, %s253
          %s255 = sshll.u32 %s248, 4
          %s256 = int_to_ptr.vmem [resolvable:$true] %s255
          %261 = dma.hbm_to_vmem [thread:$0]  %s254, 256, %s256, %s245, 128, 128, 8
        $region28: #{tpu_custom_call.1} parent=15 // pred_fallthru
          _
        // Predicated region
        $region29: #{tpu_custom_call.1} parent=15 // pred_check
          %p262 = pneg %p122
        $region30: #{tpu_custom_call.1} parent=15 // pred_check_branch
          %264 = sbr.rel (%p262) target = $region32
        $region31: #{tpu_custom_call.1} parent=15 // pred_region
          %p265 = scmp.lt.s32.totalorder %s24, 1
          %s266 = scalar_select %p265, %s24, 1
          %s267 = scalar_lea.vmem %s3, %s266
        $region32: #{tpu_custom_call.1} parent=15 // pred_fallthru
          _
      $region16: #{tpu_custom_call.1} parent=5 // pred_fallthru
        _
      %p268 = scmp.le.s32.totalorder 1, %s24
      %p269 = scmp.lt.s32.totalorder %s24, 3
      %p270 = pnand %p268, %p269
      %p271 = pneg %p270
      // Predicated region
      $region33: #{tpu_custom_call.1} parent=5 // pred_check
        _
      $region34: #{tpu_custom_call.1} parent=5 // pred_check_branch
        %273 = sbr.rel (%p270) target = $region36
      $region35: #{tpu_custom_call.1} parent=5 // pred_region
        %s274 = ssub.s32 %s24, 1
        %s275 = sand.u32 %s37, 1
        %s276 = scalar_lea.sflag [#allocation3], %s275
        %s277 = sand.u32 %s37, 1
        %s278 = smul.addr %s277, 16
        %s279 = scalar_lea.vmem [#allocation2], %s278
        // Predicated region
        $region37: #{tpu_custom_call.1} parent=35 // pred_check
          %p280 = pneg %p50
        $region38: #{tpu_custom_call.1} parent=35 // pred_check_branch
          %282 = sbr.rel (%p280) target = $region40
        $region39: #{tpu_custom_call.1} parent=35 // pred_region
          %283 = dma.done %s276, 256
        $region40: #{tpu_custom_call.1} parent=35 // pred_fallthru
          _
        %s284 = sand.u32 %s29, 1
        %s285 = scalar_lea.sflag [#allocation6], %s284
        %s286 = sand.u32 %s63, 1
        %s287 = smul.addr %s286, 16
        %s288 = scalar_lea.vmem [#allocation5], %s287
        // Predicated region
        $region41: #{tpu_custom_call.1} parent=35 // pred_check
          %p289 = pneg %p76
        $region42: #{tpu_custom_call.1} parent=35 // pred_check_branch
          %291 = sbr.rel (%p289) target = $region44
        $region43: #{tpu_custom_call.1} parent=35 // pred_region
          %292 = dma.done %s285, 256
        $region44: #{tpu_custom_call.1} parent=35 // pred_fallthru
          _
        %s293 = sand.u32 %s29, 1
        %s294 = scalar_lea.sflag [#allocation6], %s293
        %s295 = sand.u32 %s89, 1
        %s296 = smul.addr %s295, 16
        %s297 = scalar_lea.vmem [#allocation7], %s296
        // Predicated region
        $region45: #{tpu_custom_call.1} parent=35 // pred_check
          %p298 = pneg %p102
        $region46: #{tpu_custom_call.1} parent=35 // pred_check_branch
          %300 = sbr.rel (%p298) target = $region48
        $region47: #{tpu_custom_call.1} parent=35 // pred_region
          %301 = dma.done %s294, 256
        $region48: #{tpu_custom_call.1} parent=35 // pred_fallthru
          _
        %s302 = sand.u32 %s37, 1
        %s303 = scalar_lea.sflag [#allocation3], %s302
        %s304 = sand.u32 %s37, 1
        %s305 = smul.addr %s304, 16
        %s306 = scalar_lea.vmem [#allocation2], %s305
        %p307 = pneg %p50
        %p308 = pneg %p47
        %s309 = sand.u32 %s29, 1
        %s310 = scalar_lea.sflag [#allocation6], %s309
        %s311 = sand.u32 %s63, 1
        %s312 = smul.addr %s311, 16
        %s313 = scalar_lea.vmem [#allocation5], %s312
        %p314 = pneg %p76
        %p315 = pneg %p73
        %s316 = sand.u32 %s29, 1
        %s317 = scalar_lea.sflag [#allocation6], %s316
        %s318 = sand.u32 %s89, 1
        %s319 = smul.addr %s318, 16
        %s320 = scalar_lea.vmem [#allocation7], %s319
        %p321 = pneg %p102
        %p322 = pneg %p99
        %p323 = scmp.lt.s32.totalorder %s29, 1
        %s324 = scalar_select %p323, %s29, 1
        %s325 = scalar_lea.vmem %s3, %s324
        %p326 = pneg %p128
        %p327 = pneg %p125
        %p328 = pneg %p154
        %p329 = pneg %p151
        %s330 = sand.u32 %s141, 1
        %s331 = scalar_lea.sflag [#allocation4], %s330
        %s332 = sand.u32 %s141, 1
        %s333 = smul.addr %s332, 8
        %s334 = scalar_lea.vmem [#allocation8], %s333
        %p335 = pneg %p180
        %p336 = pneg %p177
        %s337 = sand.u32 %s167, 1
        %s338 = scalar_lea.sflag [#allocation10], %s337
        %s339 = sand.u32 %s167, 1
        %s340 = smul.addr %s339, 16
        %s341 = scalar_lea.vmem [#allocation9], %s340
        %p342 = scmp.lt.s32.totalorder %s29, 1
        %s343 = scalar_select %p342, %s29, 1
        %s344 = scalar_lea.vmem %s3, %s343
        %v347 = vld [vmem:[%s279] sm:$0xff]
        %v348 = vld [vmem:[%s279 + $0x8] sm:$0xff]
        %v349 = vld [vmem:[%s288] sm:$0xff]
        %v350 = vld [vmem:[%s288 + $0x8] sm:$0xff]
        %v351 = vld [vmem:[%s297] sm:$0xff]
        %v352 = vld [vmem:[%s297 + $0x8] sm:$0xff]
        %vm353 = vcmask 130048
        %v355 = vsel %vm353, %v347, 0
        %v358 = vsel %vm353, %v349, 0
        %360 = vmatprep.subr.mxu0 0.0
        %361 = vmatpush1.xpose.msra.mxu0 %v358
        %362 = vmatprep.subr.mxu0 0.0
        %363 = vmatpush1.xpose.msra.mxu0 0.0
        %364 = vmatprep.subr.mxu0 0.0
        %365 = vmatpush1.xpose.msra.mxu0 0.0
        %366 = vmatprep.subr.mxu0 0.0
        %367 = vmatpush1.xpose.msra.mxu0 0.0
        %368 = vmatprep.subr.mxu0 0.0
        %369 = vmatpush1.xpose.msra.mxu0 0.0
        %370 = vmatprep.subr.mxu0 0.0
        %371 = vmatpush1.xpose.msra.mxu0 0.0
        %372 = vmatprep.subr.mxu0 0.0
        %373 = vmatpush1.xpose.msra.mxu0 0.0
        %374 = vmatprep.subr.mxu0 0.0
        %375 = vmatpush1.xpose.msra.mxu0 0.0
        %376 = vmatprep.subr.mxu0 0.0
        %377 = vmatpush1.xpose.msra.mxu0 0.0
        %378 = vmatprep.subr.mxu0 0.0
        %379 = vmatpush1.xpose.msra.mxu0 0.0
        %380 = vmatprep.subr.mxu0 0.0
        %381 = vmatpush1.xpose.msra.mxu0 0.0
        %382 = vmatprep.subr.mxu0 0.0
        %383 = vmatpush1.xpose.msra.mxu0 0.0
        %384 = vmatprep.subr.mxu0 0.0
        %385 = vmatpush1.xpose.msra.mxu0 0.0
        %386 = vmatprep.subr.mxu0 0.0
        %387 = vmatpush1.xpose.msra.mxu0 0.0
        %388 = vmatprep.subr.mxu0 0.0
        %389 = vmatpush1.xpose.msra.mxu0 0.0
        %390 = vmatprep.subr.mxu0 0.0
        %391 = vmatpush1.xpose.msra.mxu0 0.0
        %392 = vmatprep.subr.mxu0 0.0
        %393 = vmatpush1.xpose.msra.mxu0 0.0
        %394 = vmatprep.subr.mxu0 0.0
        %395 = vmatpush1.xpose.msra.mxu0 0.0
        %396 = vmatprep.subr.mxu0 0.0
        %397 = vmatpush1.xpose.msra.mxu0 0.0
        %398 = vmatprep.subr.mxu0 0.0
        %399 = vmatpush1.xpose.msra.mxu0 0.0
        %400 = vmatprep.subr.mxu0 0.0
        %401 = vmatpush1.xpose.msra.mxu0 0.0
        %402 = vmatprep.subr.mxu0 0.0
        %403 = vmatpush1.xpose.msra.mxu0 0.0
        %404 = vmatprep.subr.mxu0 0.0
        %405 = vmatpush1.xpose.msra.mxu0 0.0
        %406 = vmatprep.subr.mxu0 0.0
        %407 = vmatpush1.xpose.msra.mxu0 0.0
        %408 = vmatprep.subr.mxu0 0.0
        %409 = vmatpush1.xpose.msra.mxu0 0.0
        %410 = vmatprep.subr.mxu0 0.0
        %411 = vmatpush1.xpose.msra.mxu0 0.0
        %412 = vmatprep.subr.mxu0 0.0
        %413 = vmatpush1.xpose.msra.mxu0 0.0
        %414 = vmatprep.subr.mxu0 0.0
        %415 = vmatpush1.xpose.msra.mxu0 0.0
        %416 = vmatprep.subr.mxu0 0.0
        %417 = vmatpush1.xpose.msra.mxu0 0.0
        %418 = vmatprep.subr.mxu0 0.0
        %419 = vmatpush1.xpose.msra.mxu0 0.0
        %420 = vmatprep.subr.mxu0 0.0
        %421 = vmatpush1.xpose.msra.mxu0 0.0
        %422 = vmatprep.subr.mxu0 0.0
        %423 = vmatpush1.xpose.msra.mxu0 0.0
        %424 = vmatprep.mubr.f32.mxu0 0.0
        %425 = vmatmul.mubr.f32.gmra.mrb[0].mxu0 %v355
        %v426 = vpop.f32.mrb[0].mxu0
        %v427 = vadd.f32 0.0, %v426
        %v428 = vpop.f32.mrb[0].mxu0
        %429 = vdwg.mxu0
        %v431 = vsel %vm353, %v348, 0
        %v434 = vsel %vm353, %v350, 0
        %436 = vmatprep.subr.mxu0 0.0
        %437 = vmatpush1.xpose.msra.mxu0 %v434
        %438 = vmatprep.subr.mxu0 0.0
        %439 = vmatpush1.xpose.msra.mxu0 0.0
        %440 = vmatprep.subr.mxu0 0.0
        %441 = vmatpush1.xpose.msra.mxu0 0.0
        %442 = vmatprep.subr.mxu0 0.0
        %443 = vmatpush1.xpose.msra.mxu0 0.0
        %444 = vmatprep.subr.mxu0 0.0
        %445 = vmatpush1.xpose.msra.mxu0 0.0
        %446 = vmatprep.subr.mxu0 0.0
        %447 = vmatpush1.xpose.msra.mxu0 0.0
        %448 = vmatprep.subr.mxu0 0.0
        %449 = vmatpush1.xpose.msra.mxu0 0.0
        %450 = vmatprep.subr.mxu0 0.0
        %451 = vmatpush1.xpose.msra.mxu0 0.0
        %452 = vmatprep.subr.mxu0 0.0
        %453 = vmatpush1.xpose.msra.mxu0 0.0
        %454 = vmatprep.subr.mxu0 0.0
        %455 = vmatpush1.xpose.msra.mxu0 0.0
        %456 = vmatprep.subr.mxu0 0.0
        %457 = vmatpush1.xpose.msra.mxu0 0.0
        %458 = vmatprep.subr.mxu0 0.0
        %459 = vmatpush1.xpose.msra.mxu0 0.0
        %460 = vmatprep.subr.mxu0 0.0
        %461 = vmatpush1.xpose.msra.mxu0 0.0
        %462 = vmatprep.subr.mxu0 0.0
        %463 = vmatpush1.xpose.msra.mxu0 0.0
        %464 = vmatprep.subr.mxu0 0.0
        %465 = vmatpush1.xpose.msra.mxu0 0.0
        %466 = vmatprep.subr.mxu0 0.0
        %467 = vmatpush1.xpose.msra.mxu0 0.0
        %468 = vmatprep.subr.mxu0 0.0
        %469 = vmatpush1.xpose.msra.mxu0 0.0
        %470 = vmatprep.subr.mxu0 0.0
        %471 = vmatpush1.xpose.msra.mxu0 0.0
        %472 = vmatprep.subr.mxu0 0.0
        %473 = vmatpush1.xpose.msra.mxu0 0.0
        %474 = vmatprep.subr.mxu0 0.0
        %475 = vmatpush1.xpose.msra.mxu0 0.0
        %476 = vmatprep.subr.mxu0 0.0
        %477 = vmatpush1.xpose.msra.mxu0 0.0
        %478 = vmatprep.subr.mxu0 0.0
        %479 = vmatpush1.xpose.msra.mxu0 0.0
        %480 = vmatprep.subr.mxu0 0.0
        %481 = vmatpush1.xpose.msra.mxu0 0.0
        %482 = vmatprep.subr.mxu0 0.0
        %483 = vmatpush1.xpose.msra.mxu0 0.0
        %484 = vmatprep.subr.mxu0 0.0
        %485 = vmatpush1.xpose.msra.mxu0 0.0
        %486 = vmatprep.subr.mxu0 0.0
        %487 = vmatpush1.xpose.msra.mxu0 0.0
        %488 = vmatprep.subr.mxu0 0.0
        %489 = vmatpush1.xpose.msra.mxu0 0.0
        %490 = vmatprep.subr.mxu0 0.0
        %491 = vmatpush1.xpose.msra.mxu0 0.0
        %492 = vmatprep.subr.mxu0 0.0
        %493 = vmatpush1.xpose.msra.mxu0 0.0
        %494 = vmatprep.subr.mxu0 0.0
        %495 = vmatpush1.xpose.msra.mxu0 0.0
        %496 = vmatprep.subr.mxu0 0.0
        %497 = vmatpush1.xpose.msra.mxu0 0.0
        %498 = vmatprep.subr.mxu0 0.0
        %499 = vmatpush1.xpose.msra.mxu0 0.0
        %500 = vmatprep.mubr.f32.mxu0 0.0
        %501 = vmatmul.mubr.f32.gmra.mrb[0].mxu0 %v431
        %v502 = vpop.f32.mrb[0].mxu0
        %v503 = vadd.f32 0.0, %v502
        %v504 = vpop.f32.mrb[0].mxu0
        %505 = vdwg.mxu0
        %v506 = vmul.f32 %v427, 0.17677669
        %v507 = vmul.f32 %v503, 0.17677669
        %v508 = vld [vmem:[%s344] sm:$0x1]
        %vm509 = vnez %v508
        %v510 = vsel %vm509, 16843009, 0
        %v511 = vunpack.c.0.s8 %v510
        %vm512 = vcmp.ne.s32.totalorder %v511, 0
        %v513 = vsel %vm512, 1, 0
        %v514 = vlaneseq
        %v515 = vshrl.u32 %v514, 7
        %v516 = vsub.s32 0, %v515
        %v517 = vrot.slane %v513, %v516
        %vm518 = vcmp.eq.s32.totalorder %v517, 1
        %v519 = vsel %vm518, %v506, -1e+09
        %v520 = vsel %vm518, %v507, -1e+09
        %vm521 = vcmask 64512
        %v522 = vsel %vm521, %v519, -inf
        %523 = vmax.xlane.f32.xlu0 %v522
        %v524 = vpop.xlane.xlu0 %523
        %v525 = vsel %vm521, %v520, -inf
        %526 = vmax.xlane.f32.xlu0 %v525
        %v527 = vpop.xlane.xlu0 %526
        %v528 = vsub.f32 %v519, %v524
        %v529 = vsub.f32 %v520, %v527
        %v530 = vmul.f32 %v528, 1.442695
        %v531 = vpow.pop %v530
        %v532 = vmul.f32 %v529, 1.442695
        %v533 = vpow.pop %v532
        %v534 = vsel %vm521, %v531, 0.0
        %535 = vadd.xlane.f32.xlu0 %v534
        %v536 = vpop.xlane.xlu0 %535
        %v537 = vsel %vm521, %v533, 0.0
        %538 = vadd.xlane.f32.xlu0 %v537
        %v539 = vpop.xlane.xlu0 %538
        %v540 = vrcp.pop %v536
        %v541 = vmul.f32 1.0, %v540
        %v542 = vrcp.pop %v539
        %v543 = vmul.f32 1.0, %v542
        %v544 = vmul.f32 %v531, %v541
        %v545 = vmul.f32 %v533, %v543
        %v547 = vsel %vm521, %v544, 0
        %549 = vmatprep.subr.mxu0 0.0
        %550 = vmatpush1.msra.mxu0 %v351
        %551 = vmatprep.subr.mxu0 0.0
        %552 = vmatpush1.msra.mxu0 0.0
        %553 = vmatprep.subr.mxu0 0.0
        %554 = vmatpush1.msra.mxu0 0.0
        %555 = vmatprep.subr.mxu0 0.0
        %556 = vmatpush1.msra.mxu0 0.0
        %557 = vmatprep.subr.mxu0 0.0
        %558 = vmatpush1.msra.mxu0 0.0
        %559 = vmatprep.subr.mxu0 0.0
        %560 = vmatpush1.msra.mxu0 0.0
        %561 = vmatprep.subr.mxu0 0.0
        %562 = vmatpush1.msra.mxu0 0.0
        %563 = vmatprep.subr.mxu0 0.0
        %564 = vmatpush1.msra.mxu0 0.0
        %565 = vmatprep.subr.mxu0 0.0
        %566 = vmatpush1.msra.mxu0 0.0
        %567 = vmatprep.subr.mxu0 0.0
        %568 = vmatpush1.msra.mxu0 0.0
        %569 = vmatprep.subr.mxu0 0.0
        %570 = vmatpush1.msra.mxu0 0.0
        %571 = vmatprep.subr.mxu0 0.0
        %572 = vmatpush1.msra.mxu0 0.0
        %573 = vmatprep.subr.mxu0 0.0
        %574 = vmatpush1.msra.mxu0 0.0
        %575 = vmatprep.subr.mxu0 0.0
        %576 = vmatpush1.msra.mxu0 0.0
        %577 = vmatprep.subr.mxu0 0.0
        %578 = vmatpush1.msra.mxu0 0.0
        %579 = vmatprep.subr.mxu0 0.0
        %580 = vmatpush1.msra.mxu0 0.0
        %581 = vmatprep.subr.mxu0 0.0
        %582 = vmatpush1.msra.mxu0 0.0
        %583 = vmatprep.subr.mxu0 0.0
        %584 = vmatpush1.msra.mxu0 0.0
        %585 = vmatprep.subr.mxu0 0.0
        %586 = vmatpush1.msra.mxu0 0.0
        %587 = vmatprep.subr.mxu0 0.0
        %588 = vmatpush1.msra.mxu0 0.0
        %589 = vmatprep.subr.mxu0 0.0
        %590 = vmatpush1.msra.mxu0 0.0
        %591 = vmatprep.subr.mxu0 0.0
        %592 = vmatpush1.msra.mxu0 0.0
        %593 = vmatprep.subr.mxu0 0.0
        %594 = vmatpush1.msra.mxu0 0.0
        %595 = vmatprep.subr.mxu0 0.0
        %596 = vmatpush1.msra.mxu0 0.0
        %597 = vmatprep.subr.mxu0 0.0
        %598 = vmatpush1.msra.mxu0 0.0
        %599 = vmatprep.subr.mxu0 0.0
        %600 = vmatpush1.msra.mxu0 0.0
        %601 = vmatprep.subr.mxu0 0.0
        %602 = vmatpush1.msra.mxu0 0.0
        %603 = vmatprep.subr.mxu0 0.0
        %604 = vmatpush1.msra.mxu0 0.0
        %605 = vmatprep.subr.mxu0 0.0
        %606 = vmatpush1.msra.mxu0 0.0
        %607 = vmatprep.subr.mxu0 0.0
        %608 = vmatpush1.msra.mxu0 0.0
        %609 = vmatprep.subr.mxu0 0.0
        %610 = vmatpush1.msra.mxu0 0.0
        %611 = vmatprep.subr.mxu0 0.0
        %612 = vmatpush1.msra.mxu0 0.0
        %613 = vmatprep.mubr.f32.mxu0 0.0
        %614 = vmatmul.mubr.f32.gmra.mrb[0].mxu0 %v547
        %v615 = vpop.f32.mrb[0].mxu0
        %v616 = vadd.f32 0.0, %v615
        %v617 = vpop.f32.mrb[0].mxu0
        %618 = vdwg.mxu0
        %v620 = vsel %vm521, %v545, 0
        %622 = vmatprep.subr.mxu0 0.0
        %623 = vmatpush1.msra.mxu0 %v352
        %624 = vmatprep.subr.mxu0 0.0
        %625 = vmatpush1.msra.mxu0 0.0
        %626 = vmatprep.subr.mxu0 0.0
        %627 = vmatpush1.msra.mxu0 0.0
        %628 = vmatprep.subr.mxu0 0.0
        %629 = vmatpush1.msra.mxu0 0.0
        %630 = vmatprep.subr.mxu0 0.0
        %631 = vmatpush1.msra.mxu0 0.0
        %632 = vmatprep.subr.mxu0 0.0
        %633 = vmatpush1.msra.mxu0 0.0
        %634 = vmatprep.subr.mxu0 0.0
        %635 = vmatpush1.msra.mxu0 0.0
        %636 = vmatprep.subr.mxu0 0.0
        %637 = vmatpush1.msra.mxu0 0.0
        %638 = vmatprep.subr.mxu0 0.0
        %639 = vmatpush1.msra.mxu0 0.0
        %640 = vmatprep.subr.mxu0 0.0
        %641 = vmatpush1.msra.mxu0 0.0
        %642 = vmatprep.subr.mxu0 0.0
        %643 = vmatpush1.msra.mxu0 0.0
        %644 = vmatprep.subr.mxu0 0.0
        %645 = vmatpush1.msra.mxu0 0.0
        %646 = vmatprep.subr.mxu0 0.0
        %647 = vmatpush1.msra.mxu0 0.0
        %648 = vmatprep.subr.mxu0 0.0
        %649 = vmatpush1.msra.mxu0 0.0
        %650 = vmatprep.subr.mxu0 0.0
        %651 = vmatpush1.msra.mxu0 0.0
        %652 = vmatprep.subr.mxu0 0.0
        %653 = vmatpush1.msra.mxu0 0.0
        %654 = vmatprep.subr.mxu0 0.0
        %655 = vmatpush1.msra.mxu0 0.0
        %656 = vmatprep.subr.mxu0 0.0
        %657 = vmatpush1.msra.mxu0 0.0
        %658 = vmatprep.subr.mxu0 0.0
        %659 = vmatpush1.msra.mxu0 0.0
        %660 = vmatprep.subr.mxu0 0.0
        %661 = vmatpush1.msra.mxu0 0.0
        %662 = vmatprep.subr.mxu0 0.0
        %663 = vmatpush1.msra.mxu0 0.0
        %664 = vmatprep.subr.mxu0 0.0
        %665 = vmatpush1.msra.mxu0 0.0
        %666 = vmatprep.subr.mxu0 0.0
        %667 = vmatpush1.msra.mxu0 0.0
        %668 = vmatprep.subr.mxu0 0.0
        %669 = vmatpush1.msra.mxu0 0.0
        %670 = vmatprep.subr.mxu0 0.0
        %671 = vmatpush1.msra.mxu0 0.0
        %672 = vmatprep.subr.mxu0 0.0
        %673 = vmatpush1.msra.mxu0 0.0
        %674 = vmatprep.subr.mxu0 0.0
        %675 = vmatpush1.msra.mxu0 0.0
        %676 = vmatprep.subr.mxu0 0.0
        %677 = vmatpush1.msra.mxu0 0.0
        %678 = vmatprep.subr.mxu0 0.0
        %679 = vmatpush1.msra.mxu0 0.0
        %680 = vmatprep.subr.mxu0 0.0
        %681 = vmatpush1.msra.mxu0 0.0
        %682 = vmatprep.subr.mxu0 0.0
        %683 = vmatpush1.msra.mxu0 0.0
        %684 = vmatprep.subr.mxu0 0.0
        %685 = vmatpush1.msra.mxu0 0.0
        %686 = vmatprep.mubr.f32.mxu0 0.0
        %687 = vmatmul.mubr.f32.gmra.mrb[0].mxu0 %v620
        %v688 = vpop.f32.mrb[0].mxu0
        %v689 = vadd.f32 0.0, %v688
        %v690 = vpop.f32.mrb[0].mxu0
        %691 = vdwg.mxu0
        %693 = vrot.lane.b32.xlu0 %v689, 16
        %v694 = vpop.permute.xlu0 %693
        %v696 = vsel %vm353, %v616, %v694
        %vm697 = vcmask 261120
        %698 = vst.msk [vmem:[%s334] sm:$0xff] %vm697, %v696
        %699 = vst.msk [vmem:[%s341] sm:$0xff] %vm521, %v544
        %700 = vst.msk [vmem:[%s341 + $0x8] sm:$0xff] %vm521, %v545
        %s701 = sand.u32 %s141, 1
        %s702 = scalar_lea.sflag [#allocation4], %s701
        %s703 = sand.u32 %s141, 1
        %s704 = smul.addr %s703, 8
        %s705 = scalar_lea.vmem [#allocation8], %s704
        %s706 = sand.u32 %s167, 1
        %s707 = scalar_lea.sflag [#allocation10], %s706
        %s708 = sand.u32 %s167, 1
        %s709 = smul.addr %s708, 16
        %s710 = scalar_lea.vmem [#allocation9], %s709
        // Predicated region
        $region49: #{tpu_custom_call.1} parent=35 // pred_check
          %p711 = pneg %p151
        $region50: #{tpu_custom_call.1} parent=35 // pred_check_branch
          %713 = sbr.rel (%p711) target = $region52
        $region51: #{tpu_custom_call.1} parent=35 // pred_region
          %s715 = ssub.s32 128, 128
          %716 = vsyncadd %s702, %s715
          %s717 = smul.addr %s29, 128
          %s718 = scalar_lea.hbm %s4, %s717
          %s720 = sshll.u32 %s705, 4
          %s721 = int_to_ptr.vmem [resolvable:$true] %s720
          %723 = dma.vmem_to_hbm [thread:$0]  %s721, 128, %s718, %s702
        $region52: #{tpu_custom_call.1} parent=35 // pred_fallthru
          _
        // Predicated region
        $region53: #{tpu_custom_call.1} parent=35 // pred_check
          %p724 = pneg %p177
        $region54: #{tpu_custom_call.1} parent=35 // pred_check_branch
          %726 = sbr.rel (%p724) target = $region56
        $region55: #{tpu_custom_call.1} parent=35 // pred_region
          %s728 = ssub.s32 256, 256
          %729 = vsyncadd %s707, %s728
          %s730 = smul.addr %s29, 2
          %s731 = smul.addr %s730, 128
          %s732 = scalar_lea.hbm %s5, %s731
          %s733 = sshll.u32 %s710, 4
          %s734 = int_to_ptr.vmem [resolvable:$true] %s733
          %739 = dma.vmem_to_hbm [thread:$0]  %s734, 256, %s732, %s707, 128, 128, 8
        $region56: #{tpu_custom_call.1} parent=35 // pred_fallthru
          _
      $region36: #{tpu_custom_call.1} parent=5 // pred_fallthru
        _
      %p740 = scmp.le.s32.totalorder 2, %s24
      // Predicated region
      $region57: #{tpu_custom_call.1} parent=5 // pred_check
        %p741 = pneg %p740
      $region58: #{tpu_custom_call.1} parent=5 // pred_check_branch
        %743 = sbr.rel (%p741) target = $region60
      $region59: #{tpu_custom_call.1} parent=5 // pred_region
        %s744 = ssub.s32 %s24, 2
        // Predicated region
        $region61: #{tpu_custom_call.1} parent=59 // pred_check
          %p745 = pneg %p157
        $region62: #{tpu_custom_call.1} parent=59 // pred_check_branch
          %747 = sbr.rel (%p745) target = $region64
        $region63: #{tpu_custom_call.1} parent=59 // pred_region
          %s748 = sand.u32 %s142, 1
          %s749 = scalar_lea.sflag [#allocation4], %s748
          %s750 = sand.u32 %s142, 1
          %s751 = smul.addr %s750, 8
          %s752 = scalar_lea.vmem [#allocation8], %s751
          %753 = dma.done %s749, 128
        $region64: #{tpu_custom_call.1} parent=59 // pred_fallthru
          _
        // Predicated region
        $region65: #{tpu_custom_call.1} parent=59 // pred_check
          %p754 = pneg %p183
        $region66: #{tpu_custom_call.1} parent=59 // pred_check_branch
          %756 = sbr.rel (%p754) target = $region68
        $region67: #{tpu_custom_call.1} parent=59 // pred_region
          %s757 = sand.u32 %s168, 1
          %s758 = scalar_lea.sflag [#allocation10], %s757
          %s759 = sand.u32 %s168, 1
          %s760 = smul.addr %s759, 16
          %s761 = scalar_lea.vmem [#allocation9], %s760
          %762 = dma.done %s758, 256
        $region68: #{tpu_custom_call.1} parent=59 // pred_fallthru
          _
      $region60: #{tpu_custom_call.1} parent=5 // pred_fallthru
        _
    $region6: #{tpu_custom_call.1} parent=1 // loop_footer
      %s28 = sadd.s32 1, %s24
    $region7: #{tpu_custom_call.1} parent=1 // loop_footer_branch
      %23 = sbr.rel target = $region3
    $region8: #{tpu_custom_call.1} parent=1 // loop_exit
      _
    %763 = vsyncpa [#allocation3], 1
    %s764 = scalar_lea.sflag [#allocation3], 1
    %765 = vsyncpa %s764, 1
    %766 = vsyncpa [#allocation6], 1
    %s767 = scalar_lea.sflag [#allocation6], 1
    %768 = vsyncpa %s767, 1
    %769 = vsyncpa [#allocation4], 1
    %s770 = scalar_lea.sflag [#allocation4], 1
    %771 = vsyncpa %s770, 1
    %772 = vsyncpa [#allocation10], 1
    %s773 = scalar_lea.sflag [#allocation10], 1
    %774 = vsyncpa %s773, 1

</llo_original>
